<compile_context>
chip_gen: v7x
topology: tpu7x:2x2x1
jax: 0.10.0
libtpu: 0.0.40
codegen_flags: <defaults>
</compile_context>

<pallas_src>
import functools

import jax
import jax.numpy as jnp
from jax.experimental import pallas as pl
from jax.experimental.pallas import tpu as pltpu

D_IN = 784        # 28 * 28
D_HID = 200       # logical hidden width (torch module)
H_PAD = 256       # hidden width padded to a lane multiple (zero padding)
NEG_SLOPE = 0.01
DROP_P = 0.2
# keep an element iff rnd >= threshold, with rnd uniform int32 in [0, 2^31)
_DROP_THRESHOLD = int(DROP_P * (1 << 31))


def _round_up(x, m):
    return (x + m - 1) // m * m


def _generator_kernel(training, *refs):
    if training:
        rnd_ref, z_ref, w1_ref, b1_ref, w2_ref, b2_ref, o_ref = refs
    else:
        z_ref, w1_ref, b1_ref, w2_ref, b2_ref, o_ref = refs

    # Linear(784 -> 256 padded): MXU matmul with f32 accumulation, then bias.
    h = jnp.dot(z_ref[...], w1_ref[...], preferred_element_type=jnp.float32)
    h = h + b1_ref[...]

    # LeakyReLU(0.01), kept in f32 (v5e has no bf16 VPU path).
    h = jnp.where(h > 0, h, NEG_SLOPE * h)

    if training:
        # Inverted dropout (keep prob 1 - p), single int32 threshold compare.
        # TODO(synk): RNG stream differs from torch's nn.Dropout (same
        # Bernoulli(0.8) keep distribution, not bit-identical masks).
        keep = rnd_ref[...] >= jnp.int32(_DROP_THRESHOLD)
        h = jnp.where(keep, h * (1.0 / (1.0 - DROP_P)), 0.0)

    # Linear(256 padded -> 784) + Tanh.  Padded hidden rows of w2 are zero,
    # so the padding contributes nothing to the result.
    y = jnp.dot(h.astype(w2_ref.dtype), w2_ref[...],
                preferred_element_type=jnp.float32)
    y = y + b2_ref[...]
    o_ref[...] = jnp.tanh(y).astype(o_ref.dtype)


def generator_forward(z, params, *, training=False, rng_key=None,
                      block_b=512, dtype=jnp.float32):
    """z: any shape (B, ...) flattening to (B, 784). Returns (B, 784) `dtype`."""
    B = z.shape[0]
    z2d = z.reshape(B, -1)
    assert z2d.shape == (B, D_IN), f"expected flattened dim {D_IN}, got {z2d.shape}"

    # Batch tile: multiple of 8 sublanes, capped by block_b; pad B up to a
    # tile multiple so the grid divides evenly.
    tb = min(block_b, _round_up(B, 8))
    Bp = _round_up(B, tb)
    z2d = z2d.astype(dtype)
    if Bp != B:
        z2d = jnp.pad(z2d, ((0, Bp - B), (0, 0)))

    # Zero-pad hidden dim 200 -> 256 (lane-dense hidden activations, full MXU
    # columns); biases stay f32.
    w1 = jnp.pad(params["w1"].astype(dtype), ((0, 0), (0, H_PAD - D_HID)))
    b1 = jnp.pad(params["b1"].astype(jnp.float32), (0, H_PAD - D_HID)).reshape(1, H_PAD)
    w2 = jnp.pad(params["w2"].astype(dtype), ((0, H_PAD - D_HID), (0, 0)))
    b2 = params["b2"].astype(jnp.float32).reshape(1, D_IN)

    grid = (Bp // tb,)

    in_specs = [
        pl.BlockSpec((tb, D_IN), lambda i: (i, 0)),     # z tile (pipelined)
        pl.BlockSpec((D_IN, H_PAD), lambda i: (0, 0)),  # w1 (resident)
        pl.BlockSpec((1, H_PAD), lambda i: (0, 0)),     # b1 (resident)
        pl.BlockSpec((H_PAD, D_IN), lambda i: (0, 0)),  # w2 (resident)
        pl.BlockSpec((1, D_IN), lambda i: (0, 0)),      # b2 (resident)
    ]
    inputs = [z2d, w1, b1, w2, b2]

    if training:
        if rng_key is None:
            rng_key = jax.random.PRNGKey(0)
        # Uniform int32 in [0, 2^31); each batch tile reads its own slice, so
        # masks differ per tile automatically.
        rnd = (jax.random.bits(rng_key, (Bp, H_PAD), dtype=jnp.uint32) >> 1).astype(jnp.int32)
        inputs = [rnd] + inputs
        in_specs = [pl.BlockSpec((tb, H_PAD), lambda i: (i, 0))] + in_specs

    out = pl.pallas_call(
        functools.partial(_generator_kernel, training),
        out_shape=jax.ShapeDtypeStruct((Bp, D_IN), dtype),
        grid=grid,
        in_specs=in_specs,
        out_specs=pl.BlockSpec((tb, D_IN), lambda i: (i, 0)),
        compiler_params=pltpu.CompilerParams(
            dimension_semantics=("parallel",)),
    )(*inputs)
    return out[:B]


def init_params(key):
    """Deterministic init matching nn.Linear shapes (uniform +/- 1/sqrt(fan_in)).

    Weights are stored as (in_features, out_features): the kernel computes
    x @ W + b (torch stores (out, in); pre-transpose when importing weights).
    """
    k1, k2, k3, k4 = jax.random.split(key, 4)
    s1 = 1.0 / jnp.sqrt(jnp.float32(D_IN))
    s2 = 1.0 / jnp.sqrt(jnp.float32(D_HID))
    return {
        "w1": jax.random.uniform(k1, (D_IN, D_HID), jnp.float32, -s1, s1),
        "b1": jax.random.uniform(k2, (D_HID,), jnp.float32, -s1, s1),
        "w2": jax.random.uniform(k3, (D_HID, D_IN), jnp.float32, -s2, s2),
        "b2": jax.random.uniform(k4, (D_IN,), jnp.float32, -s2, s2),
    }


def _reference_eval(z, params):
    """Pure-JAX reference (eval mode: dropout is identity)."""
    B = z.shape[0]
    x = z.reshape(B, -1).astype(jnp.float32)
    h = x @ params["w1"] + params["b1"]
    h = jnp.where(h > 0, h, NEG_SLOPE * h)
    y = h @ params["w2"] + params["b2"]
    return jnp.tanh(y)


if __name__ == "__main__":
    key = jax.random.PRNGKey(0)
    k_param, k_z, k_big, k_drop = jax.random.split(key, 4)

    params = init_params(k_param)
    # MNIST-like latent/input: (B, 1, 28, 28) -> forward flattens to (B, 784)
    z = jax.random.normal(k_z, (2, 1, 28, 28), jnp.float32)

    # Eval-mode forward (dropout = identity), f32 streaming, single tile.
    out_eval = jax.block_until_ready(generator_forward(z, params, training=False))
    ref = _reference_eval(z, params)
    assert out_eval.shape == (2, D_IN)
    assert jnp.allclose(out_eval, ref, atol=1e-2, rtol=1e-2), "f32 eval mismatch vs reference"

    # Multi-tile path: grid of 3 batch tiles, exercises batch padding/slicing.
    z_big = jax.random.normal(k_big, (20, D_IN), jnp.float32)
    out_big = jax.block_until_ready(
        generator_forward(z_big, params, training=False, block_b=8))
    ref_big = _reference_eval(z_big, params)
    assert out_big.shape == (20, D_IN)
    assert jnp.allclose(out_big, ref_big, atol=1e-2, rtol=1e-2), "multi-tile mismatch"

    # bf16 activation/weight streaming (f32 accumulation inside the kernel).
    out_bf16 = jax.block_until_ready(
        generator_forward(z, params, training=False, dtype=jnp.bfloat16))
    assert out_bf16.dtype == jnp.bfloat16
    assert jnp.allclose(out_bf16.astype(jnp.float32), ref, atol=5e-2), "bf16 mismatch"

    # Train-mode forward (dropout active via host-supplied random bits).
    out_train = jax.block_until_ready(
        generator_forward(z, params, training=True, rng_key=k_drop))
    assert out_train.shape == (2, D_IN)
    assert bool(jnp.all(jnp.isfinite(out_train)))
    assert not bool(jnp.allclose(out_train, out_eval)), "dropout had no effect"

    print("KERNEL_OK")
</pallas_src>

<mosaic_0001>
module attributes {stable_mosaic.version = 11 : i64} {
  func.func @_generator_kernel(%arg0: i32, %arg1: memref<8x784xf32, #tpu.memory_space<vmem>>, %arg2: memref<784x256xf32, #tpu.memory_space<vmem>>, %arg3: memref<1x256xf32, #tpu.memory_space<vmem>>, %arg4: memref<256x784xf32, #tpu.memory_space<vmem>>, %arg5: memref<1x784xf32, #tpu.memory_space<vmem>>, %arg6: memref<8x784xf32, #tpu.memory_space<vmem>>) attributes {dimension_semantics = [#tpu.dimension_semantics<parallel>], iteration_bounds = array<i64: 1>, scalar_prefetch = 0 : i64, scratch_operands = 0 : i64, tpu.core_type = #tpu.core_type<tc>, window_params = [{transform_indices = @transform_0, window_bounds = array<i64: 8, 784>}, {pipeline_mode = #tpu.pipeline_mode<synchronous>, transform_indices = @transform_1, window_bounds = array<i64: 784, 256>}, {pipeline_mode = #tpu.pipeline_mode<synchronous>, transform_indices = @transform_2, window_bounds = array<i64: 1, 256>}, {pipeline_mode = #tpu.pipeline_mode<synchronous>, transform_indices = @transform_3, window_bounds = array<i64: 256, 784>}, {pipeline_mode = #tpu.pipeline_mode<synchronous>, transform_indices = @transform_4, window_bounds = array<i64: 1, 784>}, {transform_indices = @transform_5, window_bounds = array<i64: 8, 784>}]} {
    %c0 = arith.constant 0 : index
    %c0_0 = arith.constant 0 : index
    %0 = vector.load %arg1[%c0, %c0_0] : memref<8x784xf32, #tpu.memory_space<vmem>>, vector<8x784xf32>
    %c0_1 = arith.constant 0 : index
    %c0_2 = arith.constant 0 : index
    %1 = vector.load %arg2[%c0_1, %c0_2] : memref<784x256xf32, #tpu.memory_space<vmem>>, vector<784x256xf32>
    %cst = arith.constant dense<0.000000e+00> : vector<8x256xf32>
    %2 = tpu.matmul %0, %1, %cst {dimension_numbers = #tpu.dot_dimension_numbers<[1], [0], [0], [1], [0, 0, 1, 1], [], []>} : vector<8x784xf32>, vector<784x256xf32>, vector<8x256xf32> -> vector<8x256xf32>
    %c0_3 = arith.constant 0 : index
    %c0_4 = arith.constant 0 : index
    %3 = vector.load %arg3[%c0_3, %c0_4] : memref<1x256xf32, #tpu.memory_space<vmem>>, vector<1x256xf32>
    %4 = vector.broadcast %3 : vector<1x256xf32> to vector<8x256xf32>
    %5 = arith.addf %2, %4 : vector<8x256xf32>
    %cst_5 = arith.constant 0.000000e+00 : f32
    %6 = vector.broadcast %cst_5 : f32 to vector<8x256xf32>
    %7 = arith.cmpf ogt, %5, %6 : vector<8x256xf32>
    %cst_6 = arith.constant 0.00999999977 : f32
    %8 = vector.broadcast %cst_6 : f32 to vector<8x256xf32>
    %9 = arith.mulf %8, %5 : vector<8x256xf32>
    %10 = arith.select %7, %5, %9 : vector<8x256xi1>, vector<8x256xf32>
    %c0_7 = arith.constant 0 : index
    %c0_8 = arith.constant 0 : index
    %11 = vector.load %arg4[%c0_7, %c0_8] : memref<256x784xf32, #tpu.memory_space<vmem>>, vector<256x784xf32>
    %cst_9 = arith.constant dense<0.000000e+00> : vector<8x784xf32>
    %12 = tpu.matmul %10, %11, %cst_9 {dimension_numbers = #tpu.dot_dimension_numbers<[1], [0], [0], [1], [0, 0, 1, 1], [], []>} : vector<8x256xf32>, vector<256x784xf32>, vector<8x784xf32> -> vector<8x784xf32>
    %c0_10 = arith.constant 0 : index
    %c0_11 = arith.constant 0 : index
    %13 = vector.load %arg5[%c0_10, %c0_11] : memref<1x784xf32, #tpu.memory_space<vmem>>, vector<1x784xf32>
    %14 = vector.broadcast %13 : vector<1x784xf32> to vector<8x784xf32>
    %15 = arith.addf %12, %14 : vector<8x784xf32>
    %16 = math.tanh %15 : vector<8x784xf32>
    %c0_12 = arith.constant 0 : index
    %c0_13 = arith.constant 0 : index
    %17 = vector.load %arg6[%c0_12, %c0_13] : memref<8x784xf32, #tpu.memory_space<vmem>>, vector<8x784xf32>
    tpu.vector_store %arg6[%c0_12, %c0_13], %16 {strides = array<i32>} : memref<8x784xf32, #tpu.memory_space<vmem>>, vector<8x784xf32>,
    return
  }
  func.func @transform_0(%arg0: i32) -> (i32, i32) {
    %c0_i32 = arith.constant 0 : i32
    %c0_i32_0 = arith.constant 0 : i32
    return %arg0, %c0_i32 : i32, i32
  }
  func.func @transform_1(%arg0: i32) -> (i32, i32) {
    %c0_i32 = arith.constant 0 : i32
    %c0_i32_0 = arith.constant 0 : i32
    %c0_i32_1 = arith.constant 0 : i32
    return %c0_i32, %c0_i32_0 : i32, i32
  }
  func.func @transform_2(%arg0: i32) -> (i32, i32) {
    %c0_i32 = arith.constant 0 : i32
    %c0_i32_0 = arith.constant 0 : i32
    %c0_i32_1 = arith.constant 0 : i32
    return %c0_i32, %c0_i32_0 : i32, i32
  }
  func.func @transform_3(%arg0: i32) -> (i32, i32) {
    %c0_i32 = arith.constant 0 : i32
    %c0_i32_0 = arith.constant 0 : i32
    %c0_i32_1 = arith.constant 0 : i32
    return %c0_i32, %c0_i32_0 : i32, i32
  }
  func.func @transform_4(%arg0: i32) -> (i32, i32) {
    %c0_i32 = arith.constant 0 : i32
    %c0_i32_0 = arith.constant 0 : i32
    %c0_i32_1 = arith.constant 0 : i32
    return %c0_i32, %c0_i32_0 : i32, i32
  }
  func.func @transform_5(%arg0: i32) -> (i32, i32) {
    %c0_i32 = arith.constant 0 : i32
    %c0_i32_0 = arith.constant 0 : i32
    return %arg0, %c0_i32 : i32, i32
  }
}

</mosaic_0001>

<llo_original>
// kernel: tpu_custom_call.1
$region0: #{tpu_custom_call.1}
  #allocation0 [shape = 'u32[]', space=smem, size = 0x4, offset = 0x4, fixed_abs, tag = 'smem constant byte address 0x4 - core index']
  #allocation1 [shape = 'u32[144,128]{1,0:T(1,128)}', space=vmem, size = 0x12000, scoped, tag = 'internal scratch']
  %s0 = inlined_call_operand.vmem [shape: f32[8,784], index: 0, kind: input, shape index: {}]
  %s1 = inlined_call_operand.vmem [shape: f32[784,256], index: 1, kind: input, shape index: {}]
  %s2 = inlined_call_operand.vmem [shape: f32[1,256], index: 2, kind: input, shape index: {}]
  %s3 = inlined_call_operand.vmem [shape: f32[256,784], index: 3, kind: input, shape index: {}]
  %s4 = inlined_call_operand.vmem [shape: f32[1,784], index: 4, kind: input, shape index: {}]
  %s5 = inlined_call_operand.hbm [shape: f32[8,784], index: 5, kind: output, shape index: {}]
  %s6 = sld [smem:[#allocation0]]
  $region30: #{tpu_custom_call.1} parent=0
    _
  %s8 = ssub.s32 1, %s6
  %s9 = scalar_select 0, %s8, %s6
  $region1: #{tpu_custom_call.1} parent=0
    #allocation2 [shape = 'u8[28672]{0}', space=vmem, size = 0x7000, scoped, tag = 'output window, operand 0, single buffered']
    #allocation3 [shape = 's32[1]{0}', space=sflag, size = 0x4, scoped, tag = 'scoped memory for tpu_custom_call.1']
    %10 = vsyncpa [#allocation3], 0
    // Predicated region
    $region2: #{tpu_custom_call.1} parent=1 // pred_check
      _
    $region3: #{tpu_custom_call.1} parent=1 // pred_check_branch
      %12 = sbr.rel (0) target = $region5
    $region4: #{tpu_custom_call.1} parent=1 // pred_region
      _
    $region5: #{tpu_custom_call.1} parent=1 // pred_fallthru
      _
    // Predicated region
    $region6: #{tpu_custom_call.1} parent=1 // pred_check
      _
    $region7: #{tpu_custom_call.1} parent=1 // pred_check_branch
      %14 = sbr.rel (0) target = $region9
    $region8: #{tpu_custom_call.1} parent=1 // pred_region
      _
    $region9: #{tpu_custom_call.1} parent=1 // pred_fallthru
      _
    // Predicated region
    $region10: #{tpu_custom_call.1} parent=1 // pred_check
      _
    $region11: #{tpu_custom_call.1} parent=1 // pred_check_branch
      %16 = sbr.rel (0) target = $region13
    $region12: #{tpu_custom_call.1} parent=1 // pred_region
      _
    $region13: #{tpu_custom_call.1} parent=1 // pred_fallthru
      _
    // Predicated region
    $region14: #{tpu_custom_call.1} parent=1 // pred_check
      _
    $region15: #{tpu_custom_call.1} parent=1 // pred_check_branch
      %18 = sbr.rel (0) target = $region17
    $region16: #{tpu_custom_call.1} parent=1 // pred_region
      _
    $region17: #{tpu_custom_call.1} parent=1 // pred_fallthru
      _
    // Predicated region
    $region18: #{tpu_custom_call.1} parent=1 // pred_check
      _
    $region19: #{tpu_custom_call.1} parent=1 // pred_check_branch
      %20 = sbr.rel (0) target = $region21
    $region20: #{tpu_custom_call.1} parent=1 // pred_region
      _
    $region21: #{tpu_custom_call.1} parent=1 // pred_fallthru
      _
    %v21 = vld [vmem:[%s0] sm:$0xff]
    %v22 = vld [vmem:[%s0 + $0x8] sm:$0xff]
    %v23 = vld [vmem:[%s0 + $0x10] sm:$0xff]
    %v24 = vld [vmem:[%s0 + $0x18] sm:$0xff]
    %v25 = vld [vmem:[%s0 + $0x20] sm:$0xff]
    %v26 = vld [vmem:[%s0 + $0x28] sm:$0xff]
    %v27 = vld [vmem:[%s0 + $0x30] sm:$0xff]
    %v28 = vld [vmem:[%s1] sm:$0xff]
    %v29 = vld [vmem:[%s1 + $0x8] sm:$0xff]
    %v30 = vld [vmem:[%s1 + $0x10] sm:$0xff]
    %v31 = vld [vmem:[%s1 + $0x18] sm:$0xff]
    %v32 = vld [vmem:[%s1 + $0x20] sm:$0xff]
    %v33 = vld [vmem:[%s1 + $0x28] sm:$0xff]
    %v34 = vld [vmem:[%s1 + $0x30] sm:$0xff]
    %v35 = vld [vmem:[%s1 + $0x38] sm:$0xff]
    %v36 = vld [vmem:[%s1 + $0x40] sm:$0xff]
    %v37 = vld [vmem:[%s1 + $0x48] sm:$0xff]
    %v38 = vld [vmem:[%s1 + $0x50] sm:$0xff]
    %v39 = vld [vmem:[%s1 + $0x58] sm:$0xff]
    %v40 = vld [vmem:[%s1 + $0x60] sm:$0xff]
    %v41 = vld [vmem:[%s1 + $0x68] sm:$0xff]
    %v42 = vld [vmem:[%s1 + $0x70] sm:$0xff]
    %v43 = vld [vmem:[%s1 + $0x78] sm:$0xff]
    %v44 = vld [vmem:[%s1 + $0x80] sm:$0xff]
    %v45 = vld [vmem:[%s1 + $0x88] sm:$0xff]
    %v46 = vld [vmem:[%s1 + $0x90] sm:$0xff]
    %v47 = vld [vmem:[%s1 + $0x98] sm:$0xff]
    %v48 = vld [vmem:[%s1 + $0xa0] sm:$0xff]
    %v49 = vld [vmem:[%s1 + $0xa8] sm:$0xff]
    %v50 = vld [vmem:[%s1 + $0xb0] sm:$0xff]
    %v51 = vld [vmem:[%s1 + $0xb8] sm:$0xff]
    %v52 = vld [vmem:[%s1 + $0xc0] sm:$0xff]
    %v53 = vld [vmem:[%s1 + $0xc8] sm:$0xff]
    %v54 = vld [vmem:[%s1 + $0xd0] sm:$0xff]
    %v55 = vld [vmem:[%s1 + $0xd8] sm:$0xff]
    %v56 = vld [vmem:[%s1 + $0xe0] sm:$0xff]
    %v57 = vld [vmem:[%s1 + $0xe8] sm:$0xff]
    %v58 = vld [vmem:[%s1 + $0xf0] sm:$0xff]
    %v59 = vld [vmem:[%s1 + $0xf8] sm:$0xff]
    %v60 = vld [vmem:[%s1 + $0x100] sm:$0xff]
    %v61 = vld [vmem:[%s1 + $0x108] sm:$0xff]
    %v62 = vld [vmem:[%s1 + $0x110] sm:$0xff]
    %v63 = vld [vmem:[%s1 + $0x118] sm:$0xff]
    %v64 = vld [vmem:[%s1 + $0x120] sm:$0xff]
    %v65 = vld [vmem:[%s1 + $0x128] sm:$0xff]
    %v66 = vld [vmem:[%s1 + $0x130] sm:$0xff]
    %v67 = vld [vmem:[%s1 + $0x138] sm:$0xff]
    %v68 = vld [vmem:[%s1 + $0x140] sm:$0xff]
    %v69 = vld [vmem:[%s1 + $0x148] sm:$0xff]
    %v70 = vld [vmem:[%s1 + $0x150] sm:$0xff]
    %v71 = vld [vmem:[%s1 + $0x158] sm:$0xff]
    %v72 = vld [vmem:[%s1 + $0x160] sm:$0xff]
    %v73 = vld [vmem:[%s1 + $0x168] sm:$0xff]
    %v74 = vld [vmem:[%s1 + $0x170] sm:$0xff]
    %v75 = vld [vmem:[%s1 + $0x178] sm:$0xff]
    %v76 = vld [vmem:[%s1 + $0x180] sm:$0xff]
    %v77 = vld [vmem:[%s1 + $0x188] sm:$0xff]
    %v78 = vld [vmem:[%s1 + $0x190] sm:$0xff]
    %v79 = vld [vmem:[%s1 + $0x198] sm:$0xff]
    %v80 = vld [vmem:[%s1 + $0x1a0] sm:$0xff]
    %v81 = vld [vmem:[%s1 + $0x1a8] sm:$0xff]
    %v82 = vld [vmem:[%s1 + $0x1b0] sm:$0xff]
    %v83 = vld [vmem:[%s1 + $0x1b8] sm:$0xff]
    %v84 = vld [vmem:[%s1 + $0x1c0] sm:$0xff]
    %v85 = vld [vmem:[%s1 + $0x1c8] sm:$0xff]
    %v86 = vld [vmem:[%s1 + $0x1d0] sm:$0xff]
    %v87 = vld [vmem:[%s1 + $0x1d8] sm:$0xff]
    %v88 = vld [vmem:[%s1 + $0x1e0] sm:$0xff]
    %v89 = vld [vmem:[%s1 + $0x1e8] sm:$0xff]
    %v90 = vld [vmem:[%s1 + $0x1f0] sm:$0xff]
    %v91 = vld [vmem:[%s1 + $0x1f8] sm:$0xff]
    %v92 = vld [vmem:[%s1 + $0x200] sm:$0xff]
    %v93 = vld [vmem:[%s1 + $0x208] sm:$0xff]
    %v94 = vld [vmem:[%s1 + $0x210] sm:$0xff]
    %v95 = vld [vmem:[%s1 + $0x218] sm:$0xff]
    %v96 = vld [vmem:[%s1 + $0x220] sm:$0xff]
    %v97 = vld [vmem:[%s1 + $0x228] sm:$0xff]
    %v98 = vld [vmem:[%s1 + $0x230] sm:$0xff]
    %v99 = vld [vmem:[%s1 + $0x238] sm:$0xff]
    %v100 = vld [vmem:[%s1 + $0x240] sm:$0xff]
    %v101 = vld [vmem:[%s1 + $0x248] sm:$0xff]
    %v102 = vld [vmem:[%s1 + $0x250] sm:$0xff]
    %v103 = vld [vmem:[%s1 + $0x258] sm:$0xff]
    %v104 = vld [vmem:[%s1 + $0x260] sm:$0xff]
    %v105 = vld [vmem:[%s1 + $0x268] sm:$0xff]
    %v106 = vld [vmem:[%s1 + $0x270] sm:$0xff]
    %v107 = vld [vmem:[%s1 + $0x278] sm:$0xff]
    %v108 = vld [vmem:[%s1 + $0x280] sm:$0xff]
    %v109 = vld [vmem:[%s1 + $0x288] sm:$0xff]
    %v110 = vld [vmem:[%s1 + $0x290] sm:$0xff]
    %v111 = vld [vmem:[%s1 + $0x298] sm:$0xff]
    %v112 = vld [vmem:[%s1 + $0x2a0] sm:$0xff]
    %v113 = vld [vmem:[%s1 + $0x2a8] sm:$0xff]
    %v114 = vld [vmem:[%s1 + $0x2b0] sm:$0xff]
    %v115 = vld [vmem:[%s1 + $0x2b8] sm:$0xff]
    %v116 = vld [vmem:[%s1 + $0x2c0] sm:$0xff]
    %v117 = vld [vmem:[%s1 + $0x2c8] sm:$0xff]
    %v118 = vld [vmem:[%s1 + $0x2d0] sm:$0xff]
    %v119 = vld [vmem:[%s1 + $0x2d8] sm:$0xff]
    %v120 = vld [vmem:[%s1 + $0x2e0] sm:$0xff]
    %v121 = vld [vmem:[%s1 + $0x2e8] sm:$0xff]
    %v122 = vld [vmem:[%s1 + $0x2f0] sm:$0xff]
    %v123 = vld [vmem:[%s1 + $0x2f8] sm:$0xff]
    %v124 = vld [vmem:[%s1 + $0x300] sm:$0xff]
    %v125 = vld [vmem:[%s1 + $0x308] sm:$0xff]
    %v126 = vld [vmem:[%s1 + $0x310] sm:$0xff]
    %v127 = vld [vmem:[%s1 + $0x318] sm:$0xff]
    %v128 = vld [vmem:[%s1 + $0x320] sm:$0xff]
    %v129 = vld [vmem:[%s1 + $0x328] sm:$0xff]
    %v130 = vld [vmem:[%s1 + $0x330] sm:$0xff]
    %v131 = vld [vmem:[%s1 + $0x338] sm:$0xff]
    %v132 = vld [vmem:[%s1 + $0x340] sm:$0xff]
    %v133 = vld [vmem:[%s1 + $0x348] sm:$0xff]
    %v134 = vld [vmem:[%s1 + $0x350] sm:$0xff]
    %v135 = vld [vmem:[%s1 + $0x358] sm:$0xff]
    %v136 = vld [vmem:[%s1 + $0x360] sm:$0xff]
    %v137 = vld [vmem:[%s1 + $0x368] sm:$0xff]
    %v138 = vld [vmem:[%s1 + $0x370] sm:$0xff]
    %v139 = vld [vmem:[%s1 + $0x378] sm:$0xff]
    %v140 = vld [vmem:[%s1 + $0x380] sm:$0xff]
    %v141 = vld [vmem:[%s1 + $0x388] sm:$0xff]
    %v142 = vld [vmem:[%s1 + $0x390] sm:$0xff]
    %v143 = vld [vmem:[%s1 + $0x398] sm:$0xff]
    %v144 = vld [vmem:[%s1 + $0x3a0] sm:$0xff]
    %v145 = vld [vmem:[%s1 + $0x3a8] sm:$0xff]
    %v146 = vld [vmem:[%s1 + $0x3b0] sm:$0xff]
    %v147 = vld [vmem:[%s1 + $0x3b8] sm:$0xff]
    %v148 = vld [vmem:[%s1 + $0x3c0] sm:$0xff]
    %v149 = vld [vmem:[%s1 + $0x3c8] sm:$0xff]
    %v150 = vld [vmem:[%s1 + $0x3d0] sm:$0xff]
    %v151 = vld [vmem:[%s1 + $0x3d8] sm:$0xff]
    %v152 = vld [vmem:[%s1 + $0x3e0] sm:$0xff]
    %v153 = vld [vmem:[%s1 + $0x3e8] sm:$0xff]
    %v154 = vld [vmem:[%s1 + $0x3f0] sm:$0xff]
    %v155 = vld [vmem:[%s1 + $0x3f8] sm:$0xff]
    %v156 = vld [vmem:[%s1 + $0x400] sm:$0xff]
    %v157 = vld [vmem:[%s1 + $0x408] sm:$0xff]
    %v158 = vld [vmem:[%s1 + $0x410] sm:$0xff]
    %v159 = vld [vmem:[%s1 + $0x418] sm:$0xff]
    %v160 = vld [vmem:[%s1 + $0x420] sm:$0xff]
    %v161 = vld [vmem:[%s1 + $0x428] sm:$0xff]
    %v162 = vld [vmem:[%s1 + $0x430] sm:$0xff]
    %v163 = vld [vmem:[%s1 + $0x438] sm:$0xff]
    %v164 = vld [vmem:[%s1 + $0x440] sm:$0xff]
    %v165 = vld [vmem:[%s1 + $0x448] sm:$0xff]
    %v166 = vld [vmem:[%s1 + $0x450] sm:$0xff]
    %v167 = vld [vmem:[%s1 + $0x458] sm:$0xff]
    %v168 = vld [vmem:[%s1 + $0x460] sm:$0xff]
    %v169 = vld [vmem:[%s1 + $0x468] sm:$0xff]
    %v170 = vld [vmem:[%s1 + $0x470] sm:$0xff]
    %v171 = vld [vmem:[%s1 + $0x478] sm:$0xff]
    %v172 = vld [vmem:[%s1 + $0x480] sm:$0xff]
    %v173 = vld [vmem:[%s1 + $0x488] sm:$0xff]
    %v174 = vld [vmem:[%s1 + $0x490] sm:$0xff]
    %v175 = vld [vmem:[%s1 + $0x498] sm:$0xff]
    %v176 = vld [vmem:[%s1 + $0x4a0] sm:$0xff]
    %v177 = vld [vmem:[%s1 + $0x4a8] sm:$0xff]
    %v178 = vld [vmem:[%s1 + $0x4b0] sm:$0xff]
    %v179 = vld [vmem:[%s1 + $0x4b8] sm:$0xff]
    %v180 = vld [vmem:[%s1 + $0x4c0] sm:$0xff]
    %v181 = vld [vmem:[%s1 + $0x4c8] sm:$0xff]
    %v182 = vld [vmem:[%s1 + $0x4d0] sm:$0xff]
    %v183 = vld [vmem:[%s1 + $0x4d8] sm:$0xff]
    %v184 = vld [vmem:[%s1 + $0x4e0] sm:$0xff]
    %v185 = vld [vmem:[%s1 + $0x4e8] sm:$0xff]
    %v186 = vld [vmem:[%s1 + $0x4f0] sm:$0xff]
    %v187 = vld [vmem:[%s1 + $0x4f8] sm:$0xff]
    %v188 = vld [vmem:[%s1 + $0x500] sm:$0xff]
    %v189 = vld [vmem:[%s1 + $0x508] sm:$0xff]
    %v190 = vld [vmem:[%s1 + $0x510] sm:$0xff]
    %v191 = vld [vmem:[%s1 + $0x518] sm:$0xff]
    %v192 = vld [vmem:[%s1 + $0x520] sm:$0xff]
    %v193 = vld [vmem:[%s1 + $0x528] sm:$0xff]
    %v194 = vld [vmem:[%s1 + $0x530] sm:$0xff]
    %v195 = vld [vmem:[%s1 + $0x538] sm:$0xff]
    %v196 = vld [vmem:[%s1 + $0x540] sm:$0xff]
    %v197 = vld [vmem:[%s1 + $0x548] sm:$0xff]
    %v198 = vld [vmem:[%s1 + $0x550] sm:$0xff]
    %v199 = vld [vmem:[%s1 + $0x558] sm:$0xff]
    %v200 = vld [vmem:[%s1 + $0x560] sm:$0xff]
    %v201 = vld [vmem:[%s1 + $0x568] sm:$0xff]
    %v202 = vld [vmem:[%s1 + $0x570] sm:$0xff]
    %v203 = vld [vmem:[%s1 + $0x578] sm:$0xff]
    %v204 = vld [vmem:[%s1 + $0x580] sm:$0xff]
    %v205 = vld [vmem:[%s1 + $0x588] sm:$0xff]
    %v206 = vld [vmem:[%s1 + $0x590] sm:$0xff]
    %v207 = vld [vmem:[%s1 + $0x598] sm:$0xff]
    %v208 = vld [vmem:[%s1 + $0x5a0] sm:$0xff]
    %v209 = vld [vmem:[%s1 + $0x5a8] sm:$0xff]
    %v210 = vld [vmem:[%s1 + $0x5b0] sm:$0xff]
    %v211 = vld [vmem:[%s1 + $0x5b8] sm:$0xff]
    %v212 = vld [vmem:[%s1 + $0x5c0] sm:$0xff]
    %v213 = vld [vmem:[%s1 + $0x5c8] sm:$0xff]
    %v214 = vld [vmem:[%s1 + $0x5d0] sm:$0xff]
    %v215 = vld [vmem:[%s1 + $0x5d8] sm:$0xff]
    %v216 = vld [vmem:[%s1 + $0x5e0] sm:$0xff]
    %v217 = vld [vmem:[%s1 + $0x5e8] sm:$0xff]
    %v218 = vld [vmem:[%s1 + $0x5f0] sm:$0xff]
    %v219 = vld [vmem:[%s1 + $0x5f8] sm:$0xff]
    %v220 = vld [vmem:[%s1 + $0x600] sm:$0xff]
    %v221 = vld [vmem:[%s1 + $0x608] sm:$0xff]
    %v222 = vld [vmem:[%s1 + $0x610] sm:$0xff]
    %v223 = vld [vmem:[%s1 + $0x618] sm:$0xff]
    %v224 = vld [vmem:[%s2] sm:$0x3]
    %v226 = vlaneseq
    %v227 = vshrl.u32 %v226, 7
    %v228 = vsub.s32 0, %v227
    %v229 = vrot.slane %v224, %v228
    %v230 = vlaneseq
    %v231 = vshrl.u32 %v230, 7
    %v232 = vsub.s32 1, %v231
    %v233 = vrot.slane %v224, %v232
    %vm236 = vcmask 130048
    %v238 = vsel %vm236, %v27, 0
    %240 = vmatprep.subr.mxu0 %v29
    %241 = vmatpush1.msra.mxu0 %v28
    %242 = vmatprep.subr.mxu0 %v31
    %243 = vmatpush1.msra.mxu0 %v30
    %244 = vmatprep.subr.mxu0 %v33
    %245 = vmatpush1.msra.mxu0 %v32
    %246 = vmatprep.subr.mxu0 %v35
    %247 = vmatpush1.msra.mxu0 %v34
    %248 = vmatprep.subr.mxu0 %v37
    %249 = vmatpush1.msra.mxu0 %v36
    %250 = vmatprep.subr.mxu0 %v39
    %251 = vmatpush1.msra.mxu0 %v38
    %252 = vmatprep.subr.mxu0 %v41
    %253 = vmatpush1.msra.mxu0 %v40
    %254 = vmatprep.subr.mxu0 %v43
    %255 = vmatpush1.msra.mxu0 %v42
    %256 = vmatprep.subr.mxu0 %v45
    %257 = vmatpush1.msra.mxu0 %v44
    %258 = vmatprep.subr.mxu0 %v47
    %259 = vmatpush1.msra.mxu0 %v46
    %260 = vmatprep.subr.mxu0 %v49
    %261 = vmatpush1.msra.mxu0 %v48
    %262 = vmatprep.subr.mxu0 %v51
    %263 = vmatpush1.msra.mxu0 %v50
    %264 = vmatprep.subr.mxu0 %v53
    %265 = vmatpush1.msra.mxu0 %v52
    %266 = vmatprep.subr.mxu0 %v55
    %267 = vmatpush1.msra.mxu0 %v54
    %268 = vmatprep.subr.mxu0 %v57
    %269 = vmatpush1.msra.mxu0 %v56
    %270 = vmatprep.subr.mxu0 %v59
    %271 = vmatpush1.msra.mxu0 %v58
    %272 = vmatprep.subr.mxu0 %v61
    %273 = vmatpush1.msra.mxu0 %v60
    %274 = vmatprep.subr.mxu0 %v63
    %275 = vmatpush1.msra.mxu0 %v62
    %276 = vmatprep.subr.mxu0 %v65
    %277 = vmatpush1.msra.mxu0 %v64
    %278 = vmatprep.subr.mxu0 %v67
    %279 = vmatpush1.msra.mxu0 %v66
    %280 = vmatprep.subr.mxu0 %v69
    %281 = vmatpush1.msra.mxu0 %v68
    %282 = vmatprep.subr.mxu0 %v71
    %283 = vmatpush1.msra.mxu0 %v70
    %284 = vmatprep.subr.mxu0 %v73
    %285 = vmatpush1.msra.mxu0 %v72
    %286 = vmatprep.subr.mxu0 %v75
    %287 = vmatpush1.msra.mxu0 %v74
    %288 = vmatprep.subr.mxu0 %v77
    %289 = vmatpush1.msra.mxu0 %v76
    %290 = vmatprep.subr.mxu0 %v79
    %291 = vmatpush1.msra.mxu0 %v78
    %292 = vmatprep.subr.mxu0 %v81
    %293 = vmatpush1.msra.mxu0 %v80
    %294 = vmatprep.subr.mxu0 %v83
    %295 = vmatpush1.msra.mxu0 %v82
    %296 = vmatprep.subr.mxu0 %v85
    %297 = vmatpush1.msra.mxu0 %v84
    %298 = vmatprep.subr.mxu0 %v87
    %299 = vmatpush1.msra.mxu0 %v86
    %300 = vmatprep.subr.mxu0 %v89
    %301 = vmatpush1.msra.mxu0 %v88
    %302 = vmatprep.subr.mxu0 %v91
    %303 = vmatpush1.msra.mxu0 %v90
    %304 = vmatprep.mubr.f32.mxu0 %v22
    %305 = vmatmul.mubr.f32.gmra.mrb[0].mxu0 %v21
    %v306 = vpop.f32.mrb[0].mxu0
    %v307 = vadd.f32 %v229, %v306
    %v308 = vpop.f32.mrb[0].mxu0
    %v309 = vadd.f32 %v233, %v308
    %310 = vdwg.mxu0
    %311 = vmatprep.subr.mxu0 %v93
    %312 = vmatpush1.msra.mxu0 %v92
    %313 = vmatprep.subr.mxu0 %v95
    %314 = vmatpush1.msra.mxu0 %v94
    %315 = vmatprep.subr.mxu0 %v97
    %316 = vmatpush1.msra.mxu0 %v96
    %317 = vmatprep.subr.mxu0 %v99
    %318 = vmatpush1.msra.mxu0 %v98
    %319 = vmatprep.subr.mxu0 %v101
    %320 = vmatpush1.msra.mxu0 %v100
    %321 = vmatprep.subr.mxu0 %v103
    %322 = vmatpush1.msra.mxu0 %v102
    %323 = vmatprep.subr.mxu0 %v105
    %324 = vmatpush1.msra.mxu0 %v104
    %325 = vmatprep.subr.mxu0 %v107
    %326 = vmatpush1.msra.mxu0 %v106
    %327 = vmatprep.subr.mxu0 %v109
    %328 = vmatpush1.msra.mxu0 %v108
    %329 = vmatprep.subr.mxu0 %v111
    %330 = vmatpush1.msra.mxu0 %v110
    %331 = vmatprep.subr.mxu0 %v113
    %332 = vmatpush1.msra.mxu0 %v112
    %333 = vmatprep.subr.mxu0 %v115
    %334 = vmatpush1.msra.mxu0 %v114
    %335 = vmatprep.subr.mxu0 %v117
    %336 = vmatpush1.msra.mxu0 %v116
    %337 = vmatprep.subr.mxu0 %v119
    %338 = vmatpush1.msra.mxu0 %v118
    %339 = vmatprep.subr.mxu0 %v121
    %340 = vmatpush1.msra.mxu0 %v120
    %341 = vmatprep.subr.mxu0 %v123
    %342 = vmatpush1.msra.mxu0 %v122
    %343 = vmatprep.subr.mxu0 %v125
    %344 = vmatpush1.msra.mxu0 %v124
    %345 = vmatprep.subr.mxu0 %v127
    %346 = vmatpush1.msra.mxu0 %v126
    %347 = vmatprep.subr.mxu0 %v129
    %348 = vmatpush1.msra.mxu0 %v128
    %349 = vmatprep.subr.mxu0 %v131
    %350 = vmatpush1.msra.mxu0 %v130
    %351 = vmatprep.subr.mxu0 %v133
    %352 = vmatpush1.msra.mxu0 %v132
    %353 = vmatprep.subr.mxu0 %v135
    %354 = vmatpush1.msra.mxu0 %v134
    %355 = vmatprep.subr.mxu0 %v137
    %356 = vmatpush1.msra.mxu0 %v136
    %357 = vmatprep.subr.mxu0 %v139
    %358 = vmatpush1.msra.mxu0 %v138
    %359 = vmatprep.subr.mxu0 %v141
    %360 = vmatpush1.msra.mxu0 %v140
    %361 = vmatprep.subr.mxu0 %v143
    %362 = vmatpush1.msra.mxu0 %v142
    %363 = vmatprep.subr.mxu0 %v145
    %364 = vmatpush1.msra.mxu0 %v144
    %365 = vmatprep.subr.mxu0 %v147
    %366 = vmatpush1.msra.mxu0 %v146
    %367 = vmatprep.subr.mxu0 %v149
    %368 = vmatpush1.msra.mxu0 %v148
    %369 = vmatprep.subr.mxu0 %v151
    %370 = vmatpush1.msra.mxu0 %v150
    %371 = vmatprep.subr.mxu0 %v153
    %372 = vmatpush1.msra.mxu0 %v152
    %373 = vmatprep.subr.mxu0 %v155
    %374 = vmatpush1.msra.mxu0 %v154
    %375 = vmatprep.mubr.f32.mxu0 %v24
    %376 = vmatmul.mubr.f32.gmra.mrb[0].mxu0 %v23
    %v377 = vpop.f32.mrb[0].mxu0
    %v378 = vadd.f32 %v307, %v377
    %v379 = vpop.f32.mrb[0].mxu0
    %v380 = vadd.f32 %v309, %v379
    %381 = vdwg.mxu0
    %382 = vmatprep.subr.mxu0 %v157
    %383 = vmatpush1.msra.mxu0 %v156
    %384 = vmatprep.subr.mxu0 %v159
    %385 = vmatpush1.msra.mxu0 %v158
    %386 = vmatprep.subr.mxu0 %v161
    %387 = vmatpush1.msra.mxu0 %v160
    %388 = vmatprep.subr.mxu0 %v163
    %389 = vmatpush1.msra.mxu0 %v162
    %390 = vmatprep.subr.mxu0 %v165
    %391 = vmatpush1.msra.mxu0 %v164
    %392 = vmatprep.subr.mxu0 %v167
    %393 = vmatpush1.msra.mxu0 %v166
    %394 = vmatprep.subr.mxu0 %v169
    %395 = vmatpush1.msra.mxu0 %v168
    %396 = vmatprep.subr.mxu0 %v171
    %397 = vmatpush1.msra.mxu0 %v170
    %398 = vmatprep.subr.mxu0 %v173
    %399 = vmatpush1.msra.mxu0 %v172
    %400 = vmatprep.subr.mxu0 %v175
    %401 = vmatpush1.msra.mxu0 %v174
    %402 = vmatprep.subr.mxu0 %v177
    %403 = vmatpush1.msra.mxu0 %v176
    %404 = vmatprep.subr.mxu0 %v179
    %405 = vmatpush1.msra.mxu0 %v178
    %406 = vmatprep.subr.mxu0 %v181
    %407 = vmatpush1.msra.mxu0 %v180
    %408 = vmatprep.subr.mxu0 %v183
    %409 = vmatpush1.msra.mxu0 %v182
    %410 = vmatprep.subr.mxu0 %v185
    %411 = vmatpush1.msra.mxu0 %v184
    %412 = vmatprep.subr.mxu0 %v187
    %413 = vmatpush1.msra.mxu0 %v186
    %414 = vmatprep.subr.mxu0 %v189
    %415 = vmatpush1.msra.mxu0 %v188
    %416 = vmatprep.subr.mxu0 %v191
    %417 = vmatpush1.msra.mxu0 %v190
    %418 = vmatprep.subr.mxu0 %v193
    %419 = vmatpush1.msra.mxu0 %v192
    %420 = vmatprep.subr.mxu0 %v195
    %421 = vmatpush1.msra.mxu0 %v194
    %422 = vmatprep.subr.mxu0 %v197
    %423 = vmatpush1.msra.mxu0 %v196
    %424 = vmatprep.subr.mxu0 %v199
    %425 = vmatpush1.msra.mxu0 %v198
    %426 = vmatprep.subr.mxu0 %v201
    %427 = vmatpush1.msra.mxu0 %v200
    %428 = vmatprep.subr.mxu0 %v203
    %429 = vmatpush1.msra.mxu0 %v202
    %430 = vmatprep.subr.mxu0 %v205
    %431 = vmatpush1.msra.mxu0 %v204
    %432 = vmatprep.subr.mxu0 %v207
    %433 = vmatpush1.msra.mxu0 %v206
    %434 = vmatprep.subr.mxu0 %v209
    %435 = vmatpush1.msra.mxu0 %v208
    %436 = vmatprep.subr.mxu0 %v211
    %437 = vmatpush1.msra.mxu0 %v210
    %438 = vmatprep.subr.mxu0 %v213
    %439 = vmatpush1.msra.mxu0 %v212
    %440 = vmatprep.subr.mxu0 %v215
    %441 = vmatpush1.msra.mxu0 %v214
    %442 = vmatprep.subr.mxu0 %v217
    %443 = vmatpush1.msra.mxu0 %v216
    %444 = vmatprep.subr.mxu0 %v219
    %445 = vmatpush1.msra.mxu0 %v218
    %446 = vmatprep.mubr.f32.mxu0 %v26
    %447 = vmatmul.mubr.f32.gmra.mrb[0].mxu0 %v25
    %v448 = vpop.f32.mrb[0].mxu0
    %v449 = vadd.f32 %v378, %v448
    %v450 = vpop.f32.mrb[0].mxu0
    %v451 = vadd.f32 %v380, %v450
    %452 = vdwg.mxu0
    %453 = vmatprep.subr.mxu0 %v221
    %454 = vmatpush1.msra.mxu0 %v220
    %455 = vmatprep.subr.mxu0 %v223
    %456 = vmatpush1.msra.mxu0 %v222
    %457 = vmatprep.subr.mxu0 0.0
    %458 = vmatpush1.msra.mxu0 0.0
    %459 = vmatprep.subr.mxu0 0.0
    %460 = vmatpush1.msra.mxu0 0.0
    %461 = vmatprep.subr.mxu0 0.0
    %462 = vmatpush1.msra.mxu0 0.0
    %463 = vmatprep.subr.mxu0 0.0
    %464 = vmatpush1.msra.mxu0 0.0
    %465 = vmatprep.subr.mxu0 0.0
    %466 = vmatpush1.msra.mxu0 0.0
    %467 = vmatprep.subr.mxu0 0.0
    %468 = vmatpush1.msra.mxu0 0.0
    %469 = vmatprep.subr.mxu0 0.0
    %470 = vmatpush1.msra.mxu0 0.0
    %471 = vmatprep.subr.mxu0 0.0
    %472 = vmatpush1.msra.mxu0 0.0
    %473 = vmatprep.subr.mxu0 0.0
    %474 = vmatpush1.msra.mxu0 0.0
    %475 = vmatprep.subr.mxu0 0.0
    %476 = vmatpush1.msra.mxu0 0.0
    %477 = vmatprep.subr.mxu0 0.0
    %478 = vmatpush1.msra.mxu0 0.0
    %479 = vmatprep.subr.mxu0 0.0
    %480 = vmatpush1.msra.mxu0 0.0
    %481 = vmatprep.subr.mxu0 0.0
    %482 = vmatpush1.msra.mxu0 0.0
    %483 = vmatprep.subr.mxu0 0.0
    %484 = vmatpush1.msra.mxu0 0.0
    %485 = vmatprep.subr.mxu0 0.0
    %486 = vmatpush1.msra.mxu0 0.0
    %487 = vmatprep.subr.mxu0 0.0
    %488 = vmatpush1.msra.mxu0 0.0
    %489 = vmatprep.subr.mxu0 0.0
    %490 = vmatpush1.msra.mxu0 0.0
    %491 = vmatprep.subr.mxu0 0.0
    %492 = vmatpush1.msra.mxu0 0.0
    %493 = vmatprep.subr.mxu0 0.0
    %494 = vmatpush1.msra.mxu0 0.0
    %495 = vmatprep.subr.mxu0 0.0
    %496 = vmatpush1.msra.mxu0 0.0
    %497 = vmatprep.subr.mxu0 0.0
    %498 = vmatpush1.msra.mxu0 0.0
    %499 = vmatprep.subr.mxu0 0.0
    %500 = vmatpush1.msra.mxu0 0.0
    %501 = vmatprep.subr.mxu0 0.0
    %502 = vmatpush1.msra.mxu0 0.0
    %503 = vmatprep.subr.mxu0 0.0
    %504 = vmatpush1.msra.mxu0 0.0
    %505 = vmatprep.subr.mxu0 0.0
    %506 = vmatpush1.msra.mxu0 0.0
    %507 = vmatprep.subr.mxu0 0.0
    %508 = vmatpush1.msra.mxu0 0.0
    %509 = vmatprep.subr.mxu0 0.0
    %510 = vmatpush1.msra.mxu0 0.0
    %511 = vmatprep.subr.mxu0 0.0
    %512 = vmatpush1.msra.mxu0 0.0
    %513 = vmatprep.subr.mxu0 0.0
    %514 = vmatpush1.msra.mxu0 0.0
    %515 = vmatprep.subr.mxu0 0.0
    %516 = vmatpush1.msra.mxu0 0.0
    %517 = vmatprep.mubr.f32.mxu0 0.0
    %518 = vmatmul.mubr.f32.gmra.mrb[0].mxu0 %v238
    %v519 = vpop.f32.mrb[0].mxu0
    %v520 = vadd.f32 %v449, %v519
    %v521 = vpop.f32.mrb[0].mxu0
    %v522 = vadd.f32 %v451, %v521
    %523 = vdwg.mxu0
    %vm524 = vcmp.gt.f32.partialorder %v520, 0.0
    %vm525 = vcmp.gt.f32.partialorder %v522, 0.0
    %v526 = vmul.f32 %v520, 0.01
    %v527 = vmul.f32 %v522, 0.01
    %v528 = vsel %vm524, %v520, %v526
    %v529 = vsel %vm525, %v522, %v527
    %v530 = vld [vmem:[%s3] sm:$0xff]
    %v531 = vld [vmem:[%s3 + $0x8] sm:$0xff]
    %v532 = vld [vmem:[%s3 + $0x10] sm:$0xff]
    %v533 = vld [vmem:[%s3 + $0x18] sm:$0xff]
    %v534 = vld [vmem:[%s3 + $0x20] sm:$0xff]
    %v535 = vld [vmem:[%s3 + $0x28] sm:$0xff]
    %v536 = vld [vmem:[%s3 + $0x30] sm:$0xff]
    %v537 = vld [vmem:[%s3 + $0x38] sm:$0xff]
    %v538 = vld [vmem:[%s3 + $0x40] sm:$0xff]
    %v539 = vld [vmem:[%s3 + $0x48] sm:$0xff]
    %v540 = vld [vmem:[%s3 + $0x50] sm:$0xff]
    %v541 = vld [vmem:[%s3 + $0x58] sm:$0xff]
    %v542 = vld [vmem:[%s3 + $0x60] sm:$0xff]
    %v543 = vld [vmem:[%s3 + $0x68] sm:$0xff]
    %v544 = vld [vmem:[%s3 + $0x70] sm:$0xff]
    %v545 = vld [vmem:[%s3 + $0x78] sm:$0xff]
    %v546 = vld [vmem:[%s3 + $0x80] sm:$0xff]
    %v547 = vld [vmem:[%s3 + $0x88] sm:$0xff]
    %v548 = vld [vmem:[%s3 + $0x90] sm:$0xff]
    %v549 = vld [vmem:[%s3 + $0x98] sm:$0xff]
    %v550 = vld [vmem:[%s3 + $0xa0] sm:$0xff]
    %v551 = vld [vmem:[%s3 + $0xa8] sm:$0xff]
    %v552 = vld [vmem:[%s3 + $0xb0] sm:$0xff]
    %v553 = vld [vmem:[%s3 + $0xb8] sm:$0xff]
    %v554 = vld [vmem:[%s3 + $0xc0] sm:$0xff]
    %v555 = vld [vmem:[%s3 + $0xc8] sm:$0xff]
    %v556 = vld [vmem:[%s3 + $0xd0] sm:$0xff]
    %v557 = vld [vmem:[%s3 + $0xd8] sm:$0xff]
    %v558 = vld [vmem:[%s3 + $0xe0] sm:$0xff]
    %v559 = vld [vmem:[%s3 + $0xe8] sm:$0xff]
    %v560 = vld [vmem:[%s3 + $0xf0] sm:$0xff]
    %v561 = vld [vmem:[%s3 + $0xf8] sm:$0xff]
    %v562 = vld [vmem:[%s3 + $0x100] sm:$0xff]
    %v563 = vld [vmem:[%s3 + $0x108] sm:$0xff]
    %v564 = vld [vmem:[%s3 + $0x110] sm:$0xff]
    %v565 = vld [vmem:[%s3 + $0x118] sm:$0xff]
    %v566 = vld [vmem:[%s3 + $0x120] sm:$0xff]
    %v567 = vld [vmem:[%s3 + $0x128] sm:$0xff]
    %v568 = vld [vmem:[%s3 + $0x130] sm:$0xff]
    %v569 = vld [vmem:[%s3 + $0x138] sm:$0xff]
    %v570 = vld [vmem:[%s3 + $0x140] sm:$0xff]
    %v571 = vld [vmem:[%s3 + $0x148] sm:$0xff]
    %v572 = vld [vmem:[%s3 + $0x150] sm:$0xff]
    %v573 = vld [vmem:[%s3 + $0x158] sm:$0xff]
    %v574 = vld [vmem:[%s3 + $0x160] sm:$0xff]
    %v575 = vld [vmem:[%s3 + $0x168] sm:$0xff]
    %v576 = vld [vmem:[%s3 + $0x170] sm:$0xff]
    %v577 = vld [vmem:[%s3 + $0x178] sm:$0xff]
    %v578 = vld [vmem:[%s3 + $0x180] sm:$0xff]
    %v579 = vld [vmem:[%s3 + $0x188] sm:$0xff]
    %v580 = vld [vmem:[%s3 + $0x190] sm:$0xff]
    %v581 = vld [vmem:[%s3 + $0x198] sm:$0xff]
    %v582 = vld [vmem:[%s3 + $0x1a0] sm:$0xff]
    %v583 = vld [vmem:[%s3 + $0x1a8] sm:$0xff]
    %v584 = vld [vmem:[%s3 + $0x1b0] sm:$0xff]
    %v585 = vld [vmem:[%s3 + $0x1b8] sm:$0xff]
    %v586 = vld [vmem:[%s3 + $0x1c0] sm:$0xff]
    %v587 = vld [vmem:[%s3 + $0x1c8] sm:$0xff]
    %v588 = vld [vmem:[%s3 + $0x1d0] sm:$0xff]
    %v589 = vld [vmem:[%s3 + $0x1d8] sm:$0xff]
    %v590 = vld [vmem:[%s3 + $0x1e0] sm:$0xff]
    %v591 = vld [vmem:[%s3 + $0x1e8] sm:$0xff]
    %v592 = vld [vmem:[%s3 + $0x1f0] sm:$0xff]
    %v593 = vld [vmem:[%s3 + $0x1f8] sm:$0xff]
    %v594 = vld [vmem:[%s3 + $0x200] sm:$0xff]
    %v595 = vld [vmem:[%s3 + $0x208] sm:$0xff]
    %v596 = vld [vmem:[%s3 + $0x210] sm:$0xff]
    %v597 = vld [vmem:[%s3 + $0x218] sm:$0xff]
    %v598 = vld [vmem:[%s3 + $0x220] sm:$0xff]
    %v599 = vld [vmem:[%s3 + $0x228] sm:$0xff]
    %v600 = vld [vmem:[%s3 + $0x230] sm:$0xff]
    %v601 = vld [vmem:[%s3 + $0x238] sm:$0xff]
    %v602 = vld [vmem:[%s3 + $0x240] sm:$0xff]
    %v603 = vld [vmem:[%s3 + $0x248] sm:$0xff]
    %v604 = vld [vmem:[%s3 + $0x250] sm:$0xff]
    %v605 = vld [vmem:[%s3 + $0x258] sm:$0xff]
    %v606 = vld [vmem:[%s3 + $0x260] sm:$0xff]
    %v607 = vld [vmem:[%s3 + $0x268] sm:$0xff]
    %v608 = vld [vmem:[%s3 + $0x270] sm:$0xff]
    %v609 = vld [vmem:[%s3 + $0x278] sm:$0xff]
    %v610 = vld [vmem:[%s3 + $0x280] sm:$0xff]
    %v611 = vld [vmem:[%s3 + $0x288] sm:$0xff]
    %v612 = vld [vmem:[%s3 + $0x290] sm:$0xff]
    %v613 = vld [vmem:[%s3 + $0x298] sm:$0xff]
    %v614 = vld [vmem:[%s3 + $0x2a0] sm:$0xff]
    %v615 = vld [vmem:[%s3 + $0x2a8] sm:$0xff]
    %v616 = vld [vmem:[%s3 + $0x2b0] sm:$0xff]
    %v617 = vld [vmem:[%s3 + $0x2b8] sm:$0xff]
    %v618 = vld [vmem:[%s3 + $0x2c0] sm:$0xff]
    %v619 = vld [vmem:[%s3 + $0x2c8] sm:$0xff]
    %v620 = vld [vmem:[%s3 + $0x2d0] sm:$0xff]
    %v621 = vld [vmem:[%s3 + $0x2d8] sm:$0xff]
    %v622 = vld [vmem:[%s3 + $0x2e0] sm:$0xff]
    %v623 = vld [vmem:[%s3 + $0x2e8] sm:$0xff]
    %v624 = vld [vmem:[%s3 + $0x2f0] sm:$0xff]
    %v625 = vld [vmem:[%s3 + $0x2f8] sm:$0xff]
    %v626 = vld [vmem:[%s3 + $0x300] sm:$0xff]
    %v627 = vld [vmem:[%s3 + $0x308] sm:$0xff]
    %v628 = vld [vmem:[%s3 + $0x310] sm:$0xff]
    %v629 = vld [vmem:[%s3 + $0x318] sm:$0xff]
    %v630 = vld [vmem:[%s3 + $0x320] sm:$0xff]
    %v631 = vld [vmem:[%s3 + $0x328] sm:$0xff]
    %v632 = vld [vmem:[%s3 + $0x330] sm:$0xff]
    %v633 = vld [vmem:[%s3 + $0x338] sm:$0xff]
    %v634 = vld [vmem:[%s3 + $0x340] sm:$0xff]
    %v635 = vld [vmem:[%s3 + $0x348] sm:$0xff]
    %v636 = vld [vmem:[%s3 + $0x350] sm:$0xff]
    %v637 = vld [vmem:[%s3 + $0x358] sm:$0xff]
    %v638 = vld [vmem:[%s3 + $0x360] sm:$0xff]
    %v639 = vld [vmem:[%s3 + $0x368] sm:$0xff]
    %v640 = vld [vmem:[%s3 + $0x370] sm:$0xff]
    %v641 = vld [vmem:[%s3 + $0x378] sm:$0xff]
    %v642 = vld [vmem:[%s3 + $0x380] sm:$0xff]
    %v643 = vld [vmem:[%s3 + $0x388] sm:$0xff]
    %v644 = vld [vmem:[%s3 + $0x390] sm:$0xff]
    %v645 = vld [vmem:[%s3 + $0x398] sm:$0xff]
    %v646 = vld [vmem:[%s3 + $0x3a0] sm:$0xff]
    %v647 = vld [vmem:[%s3 + $0x3a8] sm:$0xff]
    %v648 = vld [vmem:[%s3 + $0x3b0] sm:$0xff]
    %v649 = vld [vmem:[%s3 + $0x3b8] sm:$0xff]
    %v650 = vld [vmem:[%s3 + $0x3c0] sm:$0xff]
    %v651 = vld [vmem:[%s3 + $0x3c8] sm:$0xff]
    %v652 = vld [vmem:[%s3 + $0x3d0] sm:$0xff]
    %v653 = vld [vmem:[%s3 + $0x3d8] sm:$0xff]
    %v654 = vld [vmem:[%s3 + $0x3e0] sm:$0xff]
    %v655 = vld [vmem:[%s3 + $0x3e8] sm:$0xff]
    %v656 = vld [vmem:[%s3 + $0x3f0] sm:$0xff]
    %v657 = vld [vmem:[%s3 + $0x3f8] sm:$0xff]
    %v658 = vld [vmem:[%s3 + $0x400] sm:$0xff]
    %v659 = vld [vmem:[%s3 + $0x408] sm:$0xff]
    %v660 = vld [vmem:[%s3 + $0x410] sm:$0xff]
    %v661 = vld [vmem:[%s3 + $0x418] sm:$0xff]
    %v662 = vld [vmem:[%s3 + $0x420] sm:$0xff]
    %v663 = vld [vmem:[%s3 + $0x428] sm:$0xff]
    %v664 = vld [vmem:[%s3 + $0x430] sm:$0xff]
    %v665 = vld [vmem:[%s3 + $0x438] sm:$0xff]
    %v666 = vld [vmem:[%s3 + $0x440] sm:$0xff]
    %v667 = vld [vmem:[%s3 + $0x448] sm:$0xff]
    %v668 = vld [vmem:[%s3 + $0x450] sm:$0xff]
    %v669 = vld [vmem:[%s3 + $0x458] sm:$0xff]
    %v670 = vld [vmem:[%s3 + $0x460] sm:$0xff]
    %v671 = vld [vmem:[%s3 + $0x468] sm:$0xff]
    %v672 = vld [vmem:[%s3 + $0x470] sm:$0xff]
    %v673 = vld [vmem:[%s3 + $0x478] sm:$0xff]
    %v674 = vld [vmem:[%s3 + $0x480] sm:$0xff]
    %v675 = vld [vmem:[%s3 + $0x488] sm:$0xff]
    %v676 = vld [vmem:[%s3 + $0x490] sm:$0xff]
    %v677 = vld [vmem:[%s3 + $0x498] sm:$0xff]
    %v678 = vld [vmem:[%s3 + $0x4a0] sm:$0xff]
    %v679 = vld [vmem:[%s3 + $0x4a8] sm:$0xff]
    %v680 = vld [vmem:[%s3 + $0x4b0] sm:$0xff]
    %v681 = vld [vmem:[%s3 + $0x4b8] sm:$0xff]
    %v682 = vld [vmem:[%s3 + $0x4c0] sm:$0xff]
    %v683 = vld [vmem:[%s3 + $0x4c8] sm:$0xff]
    %v684 = vld [vmem:[%s3 + $0x4d0] sm:$0xff]
    %v685 = vld [vmem:[%s3 + $0x4d8] sm:$0xff]
    %v686 = vld [vmem:[%s3 + $0x4e0] sm:$0xff]
    %v687 = vld [vmem:[%s3 + $0x4e8] sm:$0xff]
    %v688 = vld [vmem:[%s3 + $0x4f0] sm:$0xff]
    %v689 = vld [vmem:[%s3 + $0x4f8] sm:$0xff]
    %v690 = vld [vmem:[%s3 + $0x500] sm:$0xff]
    %v691 = vld [vmem:[%s3 + $0x508] sm:$0xff]
    %v692 = vld [vmem:[%s3 + $0x510] sm:$0xff]
    %v693 = vld [vmem:[%s3 + $0x518] sm:$0xff]
    %v694 = vld [vmem:[%s3 + $0x520] sm:$0xff]
    %v695 = vld [vmem:[%s3 + $0x528] sm:$0xff]
    %v696 = vld [vmem:[%s3 + $0x530] sm:$0xff]
    %v697 = vld [vmem:[%s3 + $0x538] sm:$0xff]
    %v698 = vld [vmem:[%s3 + $0x540] sm:$0xff]
    %v699 = vld [vmem:[%s3 + $0x548] sm:$0xff]
    %v700 = vld [vmem:[%s3 + $0x550] sm:$0xff]
    %v701 = vld [vmem:[%s3 + $0x558] sm:$0xff]
    %v702 = vld [vmem:[%s3 + $0x560] sm:$0xff]
    %v703 = vld [vmem:[%s3 + $0x568] sm:$0xff]
    %v704 = vld [vmem:[%s3 + $0x570] sm:$0xff]
    %v705 = vld [vmem:[%s3 + $0x578] sm:$0xff]
    %v706 = vld [vmem:[%s3 + $0x580] sm:$0xff]
    %v707 = vld [vmem:[%s3 + $0x588] sm:$0xff]
    %v708 = vld [vmem:[%s3 + $0x590] sm:$0xff]
    %v709 = vld [vmem:[%s3 + $0x598] sm:$0xff]
    %v710 = vld [vmem:[%s3 + $0x5a0] sm:$0xff]
    %v711 = vld [vmem:[%s3 + $0x5a8] sm:$0xff]
    %v712 = vld [vmem:[%s3 + $0x5b0] sm:$0xff]
    %v713 = vld [vmem:[%s3 + $0x5b8] sm:$0xff]
    %v714 = vld [vmem:[%s3 + $0x5c0] sm:$0xff]
    %v715 = vld [vmem:[%s3 + $0x5c8] sm:$0xff]
    %v716 = vld [vmem:[%s3 + $0x5d0] sm:$0xff]
    %v717 = vld [vmem:[%s3 + $0x5d8] sm:$0xff]
    %v718 = vld [vmem:[%s3 + $0x5e0] sm:$0xff]
    %v719 = vld [vmem:[%s3 + $0x5e8] sm:$0xff]
    %v720 = vld [vmem:[%s3 + $0x5f0] sm:$0xff]
    %v721 = vld [vmem:[%s3 + $0x5f8] sm:$0xff]
    %v722 = vld [vmem:[%s3 + $0x600] sm:$0xff]
    %v723 = vld [vmem:[%s3 + $0x608] sm:$0xff]
    %v724 = vld [vmem:[%s3 + $0x610] sm:$0xff]
    %v725 = vld [vmem:[%s3 + $0x618] sm:$0xff]
    %v726 = vld [vmem:[%s3 + $0x620] sm:$0xff]
    %v727 = vld [vmem:[%s3 + $0x628] sm:$0xff]
    %v728 = vld [vmem:[%s3 + $0x630] sm:$0xff]
    %v729 = vld [vmem:[%s3 + $0x638] sm:$0xff]
    %v730 = vld [vmem:[%s3 + $0x640] sm:$0xff]
    %v731 = vld [vmem:[%s3 + $0x648] sm:$0xff]
    %v732 = vld [vmem:[%s3 + $0x650] sm:$0xff]
    %v733 = vld [vmem:[%s3 + $0x658] sm:$0xff]
    %v734 = vld [vmem:[%s3 + $0x660] sm:$0xff]
    %v735 = vld [vmem:[%s3 + $0x668] sm:$0xff]
    %v736 = vld [vmem:[%s3 + $0x670] sm:$0xff]
    %v737 = vld [vmem:[%s3 + $0x678] sm:$0xff]
    %v738 = vld [vmem:[%s3 + $0x680] sm:$0xff]
    %v739 = vld [vmem:[%s3 + $0x688] sm:$0xff]
    %v740 = vld [vmem:[%s3 + $0x690] sm:$0xff]
    %v741 = vld [vmem:[%s3 + $0x698] sm:$0xff]
    %v742 = vld [vmem:[%s3 + $0x6a0] sm:$0xff]
    %v743 = vld [vmem:[%s3 + $0x6a8] sm:$0xff]
    %v744 = vld [vmem:[%s3 + $0x6b0] sm:$0xff]
    %v745 = vld [vmem:[%s3 + $0x6b8] sm:$0xff]
    %v746 = vld [vmem:[%s3 + $0x6c0] sm:$0xff]
    %v747 = vld [vmem:[%s3 + $0x6c8] sm:$0xff]
    %v748 = vld [vmem:[%s3 + $0x6d0] sm:$0xff]
    %v749 = vld [vmem:[%s3 + $0x6d8] sm:$0xff]
    %v750 = vld [vmem:[%s3 + $0x6e0] sm:$0xff]
    %v751 = vld [vmem:[%s3 + $0x6e8] sm:$0xff]
    %v752 = vld [vmem:[%s3 + $0x6f0] sm:$0xff]
    %v753 = vld [vmem:[%s3 + $0x6f8] sm:$0xff]
    %v754 = vld [vmem:[%s4] sm:$0x7f]
    %v756 = vlaneseq
    %v757 = vshrl.u32 %v756, 7
    %v758 = vsub.s32 0, %v757
    %v759 = vrot.slane %v754, %v758
    %v760 = vlaneseq
    %v761 = vshrl.u32 %v760, 7
    %v762 = vsub.s32 1, %v761
    %v763 = vrot.slane %v754, %v762
    %v764 = vlaneseq
    %v765 = vshrl.u32 %v764, 7
    %v766 = vsub.s32 2, %v765
    %v767 = vrot.slane %v754, %v766
    %v768 = vlaneseq
    %v769 = vshrl.u32 %v768, 7
    %v770 = vsub.s32 3, %v769
    %v771 = vrot.slane %v754, %v770
    %v772 = vlaneseq
    %v773 = vshrl.u32 %v772, 7
    %v774 = vsub.s32 4, %v773
    %v775 = vrot.slane %v754, %v774
    %v776 = vlaneseq
    %v777 = vshrl.u32 %v776, 7
    %v778 = vsub.s32 5, %v777
    %v779 = vrot.slane %v754, %v778
    %v780 = vlaneseq
    %v781 = vshrl.u32 %v780, 7
    %v782 = vsub.s32 6, %v781
    %v783 = vrot.slane %v754, %v782
    %791 = vmatprep.subr.mxu0 %v531
    %792 = vmatpush1.msra.mxu0 %v530
    %793 = vmatprep.subr.mxu0 %v538
    %794 = vmatpush1.msra.mxu0 %v537
    %795 = vmatprep.subr.mxu0 %v545
    %796 = vmatpush1.msra.mxu0 %v544
    %797 = vmatprep.subr.mxu0 %v552
    %798 = vmatpush1.msra.mxu0 %v551
    %799 = vmatprep.subr.mxu0 %v559
    %800 = vmatpush1.msra.mxu0 %v558
    %801 = vmatprep.subr.mxu0 %v566
    %802 = vmatpush1.msra.mxu0 %v565
    %803 = vmatprep.subr.mxu0 %v573
    %804 = vmatpush1.msra.mxu0 %v572
    %805 = vmatprep.subr.mxu0 %v580
    %806 = vmatpush1.msra.mxu0 %v579
    %807 = vmatprep.subr.mxu0 %v587
    %808 = vmatpush1.msra.mxu0 %v586
    %809 = vmatprep.subr.mxu0 %v594
    %810 = vmatpush1.msra.mxu0 %v593
    %811 = vmatprep.subr.mxu0 %v601
    %812 = vmatpush1.msra.mxu0 %v600
    %813 = vmatprep.subr.mxu0 %v608
    %814 = vmatpush1.msra.mxu0 %v607
    %815 = vmatprep.subr.mxu0 %v615
    %816 = vmatpush1.msra.mxu0 %v614
    %817 = vmatprep.subr.mxu0 %v622
    %818 = vmatpush1.msra.mxu0 %v621
    %819 = vmatprep.subr.mxu0 %v629
    %820 = vmatpush1.msra.mxu0 %v628
    %821 = vmatprep.subr.mxu0 %v636
    %822 = vmatpush1.msra.mxu0 %v635
    %823 = vmatprep.subr.mxu0 %v643
    %824 = vmatpush1.msra.mxu0 %v642
    %825 = vmatprep.subr.mxu0 %v650
    %826 = vmatpush1.msra.mxu0 %v649
    %827 = vmatprep.subr.mxu0 %v657
    %828 = vmatpush1.msra.mxu0 %v656
    %829 = vmatprep.subr.mxu0 %v664
    %830 = vmatpush1.msra.mxu0 %v663
    %831 = vmatprep.subr.mxu0 %v671
    %832 = vmatpush1.msra.mxu0 %v670
    %833 = vmatprep.subr.mxu0 %v678
    %834 = vmatpush1.msra.mxu0 %v677
    %835 = vmatprep.subr.mxu0 %v685
    %836 = vmatpush1.msra.mxu0 %v684
    %837 = vmatprep.subr.mxu0 %v692
    %838 = vmatpush1.msra.mxu0 %v691
    %839 = vmatprep.subr.mxu0 %v699
    %840 = vmatpush1.msra.mxu0 %v698
    %841 = vmatprep.subr.mxu0 %v706
    %842 = vmatpush1.msra.mxu0 %v705
    %843 = vmatprep.subr.mxu0 %v713
    %844 = vmatpush1.msra.mxu0 %v712
    %845 = vmatprep.subr.mxu0 %v720
    %846 = vmatpush1.msra.mxu0 %v719
    %847 = vmatprep.subr.mxu0 %v727
    %848 = vmatpush1.msra.mxu0 %v726
    %849 = vmatprep.subr.mxu0 %v734
    %850 = vmatpush1.msra.mxu0 %v733
    %851 = vmatprep.subr.mxu0 %v741
    %852 = vmatpush1.msra.mxu0 %v740
    %853 = vmatprep.subr.mxu0 %v748
    %854 = vmatpush1.msra.mxu0 %v747
    %855 = vmatprep.mubr.f32.mxu0 %v529
    %856 = vmatmul.mubr.f32.gmra.mrb[0].mxu0 %v528
    %v857 = vpop.f32.mrb[0].mxu0
    %v858 = vadd.f32 %v759, %v857
    %v859 = vpop.f32.mrb[0].mxu0
    %v860 = vadd.f32 %v763, %v859
    %861 = vdwg.mxu0
    %862 = vmatprep.subr.mxu0 %v533
    %863 = vmatpush1.msra.mxu0 %v532
    %864 = vmatprep.subr.mxu0 %v540
    %865 = vmatpush1.msra.mxu0 %v539
    %866 = vmatprep.subr.mxu0 %v547
    %867 = vmatpush1.msra.mxu0 %v546
    %868 = vmatprep.subr.mxu0 %v554
    %869 = vmatpush1.msra.mxu0 %v553
    %870 = vmatprep.subr.mxu0 %v561
    %871 = vmatpush1.msra.mxu0 %v560
    %872 = vmatprep.subr.mxu0 %v568
    %873 = vmatpush1.msra.mxu0 %v567
    %874 = vmatprep.subr.mxu0 %v575
    %875 = vmatpush1.msra.mxu0 %v574
    %876 = vmatprep.subr.mxu0 %v582
    %877 = vmatpush1.msra.mxu0 %v581
    %878 = vmatprep.subr.mxu0 %v589
    %879 = vmatpush1.msra.mxu0 %v588
    %880 = vmatprep.subr.mxu0 %v596
    %881 = vmatpush1.msra.mxu0 %v595
    %882 = vmatprep.subr.mxu0 %v603
    %883 = vmatpush1.msra.mxu0 %v602
    %884 = vmatprep.subr.mxu0 %v610
    %885 = vmatpush1.msra.mxu0 %v609
    %886 = vmatprep.subr.mxu0 %v617
    %887 = vmatpush1.msra.mxu0 %v616
    %888 = vmatprep.subr.mxu0 %v624
    %889 = vmatpush1.msra.mxu0 %v623
    %890 = vmatprep.subr.mxu0 %v631
    %891 = vmatpush1.msra.mxu0 %v630
    %892 = vmatprep.subr.mxu0 %v638
    %893 = vmatpush1.msra.mxu0 %v637
    %894 = vmatprep.subr.mxu0 %v645
    %895 = vmatpush1.msra.mxu0 %v644
    %896 = vmatprep.subr.mxu0 %v652
    %897 = vmatpush1.msra.mxu0 %v651
    %898 = vmatprep.subr.mxu0 %v659
    %899 = vmatpush1.msra.mxu0 %v658
    %900 = vmatprep.subr.mxu0 %v666
    %901 = vmatpush1.msra.mxu0 %v665
    %902 = vmatprep.subr.mxu0 %v673
    %903 = vmatpush1.msra.mxu0 %v672
    %904 = vmatprep.subr.mxu0 %v680
    %905 = vmatpush1.msra.mxu0 %v679
    %906 = vmatprep.subr.mxu0 %v687
    %907 = vmatpush1.msra.mxu0 %v686
    %908 = vmatprep.subr.mxu0 %v694
    %909 = vmatpush1.msra.mxu0 %v693
    %910 = vmatprep.subr.mxu0 %v701
    %911 = vmatpush1.msra.mxu0 %v700
    %912 = vmatprep.subr.mxu0 %v708
    %913 = vmatpush1.msra.mxu0 %v707
    %914 = vmatprep.subr.mxu0 %v715
    %915 = vmatpush1.msra.mxu0 %v714
    %916 = vmatprep.subr.mxu0 %v722
    %917 = vmatpush1.msra.mxu0 %v721
    %918 = vmatprep.subr.mxu0 %v729
    %919 = vmatpush1.msra.mxu0 %v728
    %920 = vmatprep.subr.mxu0 %v736
    %921 = vmatpush1.msra.mxu0 %v735
    %922 = vmatprep.subr.mxu0 %v743
    %923 = vmatpush1.msra.mxu0 %v742
    %924 = vmatprep.subr.mxu0 %v750
    %925 = vmatpush1.msra.mxu0 %v749
    %926 = vmatprep.mubr.f32.mxu0 %v529
    %927 = vmatmul.mubr.f32.gmra.mrb[0].mxu0 %v528
    %v928 = vpop.f32.mrb[0].mxu0
    %v929 = vadd.f32 %v767, %v928
    %v930 = vpop.f32.mrb[0].mxu0
    %v931 = vadd.f32 %v771, %v930
    %932 = vdwg.mxu0
    %933 = vmatprep.subr.mxu0 %v535
    %934 = vmatpush1.msra.mxu0 %v534
    %935 = vmatprep.subr.mxu0 %v542
    %936 = vmatpush1.msra.mxu0 %v541
    %937 = vmatprep.subr.mxu0 %v549
    %938 = vmatpush1.msra.mxu0 %v548
    %939 = vmatprep.subr.mxu0 %v556
    %940 = vmatpush1.msra.mxu0 %v555
    %941 = vmatprep.subr.mxu0 %v563
    %942 = vmatpush1.msra.mxu0 %v562
    %943 = vmatprep.subr.mxu0 %v570
    %944 = vmatpush1.msra.mxu0 %v569
    %945 = vmatprep.subr.mxu0 %v577
    %946 = vmatpush1.msra.mxu0 %v576
    %947 = vmatprep.subr.mxu0 %v584
    %948 = vmatpush1.msra.mxu0 %v583
    %949 = vmatprep.subr.mxu0 %v591
    %950 = vmatpush1.msra.mxu0 %v590
    %951 = vmatprep.subr.mxu0 %v598
    %952 = vmatpush1.msra.mxu0 %v597
    %953 = vmatprep.subr.mxu0 %v605
    %954 = vmatpush1.msra.mxu0 %v604
    %955 = vmatprep.subr.mxu0 %v612
    %956 = vmatpush1.msra.mxu0 %v611
    %957 = vmatprep.subr.mxu0 %v619
    %958 = vmatpush1.msra.mxu0 %v618
    %959 = vmatprep.subr.mxu0 %v626
    %960 = vmatpush1.msra.mxu0 %v625
    %961 = vmatprep.subr.mxu0 %v633
    %962 = vmatpush1.msra.mxu0 %v632
    %963 = vmatprep.subr.mxu0 %v640
    %964 = vmatpush1.msra.mxu0 %v639
    %965 = vmatprep.subr.mxu0 %v647
    %966 = vmatpush1.msra.mxu0 %v646
    %967 = vmatprep.subr.mxu0 %v654
    %968 = vmatpush1.msra.mxu0 %v653
    %969 = vmatprep.subr.mxu0 %v661
    %970 = vmatpush1.msra.mxu0 %v660
    %971 = vmatprep.subr.mxu0 %v668
    %972 = vmatpush1.msra.mxu0 %v667
    %973 = vmatprep.subr.mxu0 %v675
    %974 = vmatpush1.msra.mxu0 %v674
    %975 = vmatprep.subr.mxu0 %v682
    %976 = vmatpush1.msra.mxu0 %v681
    %977 = vmatprep.subr.mxu0 %v689
    %978 = vmatpush1.msra.mxu0 %v688
    %979 = vmatprep.subr.mxu0 %v696
    %980 = vmatpush1.msra.mxu0 %v695
    %981 = vmatprep.subr.mxu0 %v703
    %982 = vmatpush1.msra.mxu0 %v702
    %983 = vmatprep.subr.mxu0 %v710
    %984 = vmatpush1.msra.mxu0 %v709
    %985 = vmatprep.subr.mxu0 %v717
    %986 = vmatpush1.msra.mxu0 %v716
    %987 = vmatprep.subr.mxu0 %v724
    %988 = vmatpush1.msra.mxu0 %v723
    %989 = vmatprep.subr.mxu0 %v731
    %990 = vmatpush1.msra.mxu0 %v730
    %991 = vmatprep.subr.mxu0 %v738
    %992 = vmatpush1.msra.mxu0 %v737
    %993 = vmatprep.subr.mxu0 %v745
    %994 = vmatpush1.msra.mxu0 %v744
    %995 = vmatprep.subr.mxu0 %v752
    %996 = vmatpush1.msra.mxu0 %v751
    %997 = vmatprep.mubr.f32.mxu0 %v529
    %998 = vmatmul.mubr.f32.gmra.mrb[0].mxu0 %v528
    %v999 = vpop.f32.mrb[0].mxu0
    %v1000 = vadd.f32 %v775, %v999
    %v1001 = vpop.f32.mrb[0].mxu0
    %v1002 = vadd.f32 %v779, %v1001
    %1003 = vdwg.mxu0
    %1004 = vmatprep.subr.mxu0 0.0
    %1005 = vmatpush1.msra.mxu0 %v536
    %1006 = vmatprep.subr.mxu0 0.0
    %1007 = vmatpush1.msra.mxu0 %v543
    %1008 = vmatprep.subr.mxu0 0.0
    %1009 = vmatpush1.msra.mxu0 %v550
    %1010 = vmatprep.subr.mxu0 0.0
    %1011 = vmatpush1.msra.mxu0 %v557
    %1012 = vmatprep.subr.mxu0 0.0
    %1013 = vmatpush1.msra.mxu0 %v564
    %1014 = vmatprep.subr.mxu0 0.0
    %1015 = vmatpush1.msra.mxu0 %v571
    %1016 = vmatprep.subr.mxu0 0.0
    %1017 = vmatpush1.msra.mxu0 %v578
    %1018 = vmatprep.subr.mxu0 0.0
    %1019 = vmatpush1.msra.mxu0 %v585
    %1020 = vmatprep.subr.mxu0 0.0
    %1021 = vmatpush1.msra.mxu0 %v592
    %1022 = vmatprep.subr.mxu0 0.0
    %1023 = vmatpush1.msra.mxu0 %v599
    %1024 = vmatprep.subr.mxu0 0.0
    %1025 = vmatpush1.msra.mxu0 %v606
    %1026 = vmatprep.subr.mxu0 0.0
    %1027 = vmatpush1.msra.mxu0 %v613
    %1028 = vmatprep.subr.mxu0 0.0
    %1029 = vmatpush1.msra.mxu0 %v620
    %1030 = vmatprep.subr.mxu0 0.0
    %1031 = vmatpush1.msra.mxu0 %v627
    %1032 = vmatprep.subr.mxu0 0.0
    %1033 = vmatpush1.msra.mxu0 %v634
    %1034 = vmatprep.subr.mxu0 0.0
    %1035 = vmatpush1.msra.mxu0 %v641
    %1036 = vmatprep.subr.mxu0 0.0
    %1037 = vmatpush1.msra.mxu0 %v648
    %1038 = vmatprep.subr.mxu0 0.0
    %1039 = vmatpush1.msra.mxu0 %v655
    %1040 = vmatprep.subr.mxu0 0.0
    %1041 = vmatpush1.msra.mxu0 %v662
    %1042 = vmatprep.subr.mxu0 0.0
    %1043 = vmatpush1.msra.mxu0 %v669
    %1044 = vmatprep.subr.mxu0 0.0
    %1045 = vmatpush1.msra.mxu0 %v676
    %1046 = vmatprep.subr.mxu0 0.0
    %1047 = vmatpush1.msra.mxu0 %v683
    %1048 = vmatprep.subr.mxu0 0.0
    %1049 = vmatpush1.msra.mxu0 %v690
    %1050 = vmatprep.subr.mxu0 0.0
    %1051 = vmatpush1.msra.mxu0 %v697
    %1052 = vmatprep.subr.mxu0 0.0
    %1053 = vmatpush1.msra.mxu0 %v704
    %1054 = vmatprep.subr.mxu0 0.0
    %1055 = vmatpush1.msra.mxu0 %v711
    %1056 = vmatprep.subr.mxu0 0.0
    %1057 = vmatpush1.msra.mxu0 %v718
    %1058 = vmatprep.subr.mxu0 0.0
    %1059 = vmatpush1.msra.mxu0 %v725
    %1060 = vmatprep.subr.mxu0 0.0
    %1061 = vmatpush1.msra.mxu0 %v732
    %1062 = vmatprep.subr.mxu0 0.0
    %1063 = vmatpush1.msra.mxu0 %v739
    %1064 = vmatprep.subr.mxu0 0.0
    %1065 = vmatpush1.msra.mxu0 %v746
    %1066 = vmatprep.subr.mxu0 0.0
    %1067 = vmatpush1.msra.mxu0 %v753
    %1068 = vmatprep.mubr.f32.mxu0 %v529
    %1069 = vmatmul.mubr.f32.gmra.mrb[0].mxu0 %v528
    %v1070 = vpop.f32.mrb[0].mxu0
    %v1071 = vadd.f32 %v783, %v1070
    %v1072 = vpop.f32.mrb[0].mxu0
    %1073 = vdwg.mxu0
    %v1074 = vtanh.pop %v858
    %v1075 = vtanh.pop %v860
    %v1076 = vtanh.pop %v929
    %v1077 = vtanh.pop %v931
    %v1078 = vtanh.pop %v1000
    %v1079 = vtanh.pop %v1002
    %v1080 = vtanh.pop %v1071
    %1081 = vst [vmem:[#allocation2] sm:$0xff] %v1074
    %1082 = vst [vmem:[#allocation2 + $0x8] sm:$0xff] %v1075
    %1083 = vst [vmem:[#allocation2 + $0x10] sm:$0xff] %v1076
    %1084 = vst [vmem:[#allocation2 + $0x18] sm:$0xff] %v1077
    %1085 = vst [vmem:[#allocation2 + $0x20] sm:$0xff] %v1078
    %1086 = vst [vmem:[#allocation2 + $0x28] sm:$0xff] %v1079
    %1087 = vst.msk [vmem:[#allocation2 + $0x30] sm:$0xff] %vm236, %v1080
    // Predicated region
    $region22: #{tpu_custom_call.1} parent=1 // pred_check
      _
    $region23: #{tpu_custom_call.1} parent=1 // pred_check_branch
      %1089 = sbr.rel (0) target = $region25
    $region24: #{tpu_custom_call.1} parent=1 // pred_region
      %s1091 = ssub.s32 896, 896
      %1092 = vsyncadd [#allocation3], %s1091
      %s1094 = sshll.u32 [#allocation2], 4
      %s1095 = int_to_ptr.vmem [resolvable:$true] %s1094
      %1097 = dma.vmem_to_hbm [thread:$0]  %s1095, 896, %s5, [#allocation3]
    $region25: #{tpu_custom_call.1} parent=1 // pred_fallthru
      _
    // Predicated region
    $region26: #{tpu_custom_call.1} parent=1 // pred_check
      _
    $region27: #{tpu_custom_call.1} parent=1 // pred_check_branch
      %1099 = sbr.rel (0) target = $region29
    $region28: #{tpu_custom_call.1} parent=1 // pred_region
      %1100 = dma.done [#allocation3], 896
    $region29: #{tpu_custom_call.1} parent=1 // pred_fallthru
      _
    %1101 = vsyncpa [#allocation3], 1

</llo_original>
